<compile_context>
chip_gen: v7x
topology: tpu7x:2x2x1
jax: 0.10.0
libtpu: 0.0.40
codegen_flags: <defaults>
</compile_context>

<pallas_src>
import functools
import numpy as np

import jax
import jax.numpy as jnp
from jax.experimental import pallas as pl
from jax.experimental.pallas import tpu as pltpu

LANE = 128
SUB = 8


def _round_up(v, m):
    return ((v + m - 1) // m) * m


def _prod(xs):
    p = 1
    for s in xs:
        p *= int(s)
    return p


# --------------------------------------------------------------------------
# Element-wise loss (criterion / side weighting are static specializations).
# --------------------------------------------------------------------------
def _elementwise_loss(x, y, criterion, side_weight, side):
    d = x - y
    if criterion == "L1":
        e = jnp.abs(d)
    elif criterion == "MSE":
        e = d * d
    elif criterion == "SmoothL1":               # beta = 1.0 (PyTorch default)
        ad = jnp.abs(d)
        e = jnp.where(ad < 1.0, 0.5 * d * d, ad - 0.5)
    elif criterion == "BCE":                    # PyTorch clamps log at -100
        lx = jnp.maximum(jnp.log(x), -100.0)
        l1x = jnp.maximum(jnp.log(1.0 - x), -100.0)
        e = -(y * lx + (1.0 - y) * l1x)
    else:
        raise ValueError(f"unknown criterion {criterion}")
    if side_weight is not None:                 # SideWeightedLoss
        cond = (x > y) if side == "lower" else (x < y)
        e = jnp.where(cond, jnp.float32(side_weight), jnp.float32(1.0)) * e
    return e


# --------------------------------------------------------------------------
# Pallas kernel: one (block_r, H, W) tile  ->  (1, H, W) partial sum over the
# leading axis.  Out-of-range leading rows of the last grid block are masked
# in-kernel (no host-side padding copies).
# --------------------------------------------------------------------------
def _loss_sum_kernel(x_ref, y_ref, out_ref, *, criterion, side_weight, side,
                     total_r, block_r, needs_mask):
    x = x_ref[...].astype(jnp.float32)          # (block_r, H, W)
    y = y_ref[...].astype(jnp.float32)
    e = _elementwise_loss(x, y, criterion, side_weight, side)
    if needs_mask:
        r0 = pl.program_id(0) * block_r
        ridx = r0 + jax.lax.broadcasted_iota(jnp.int32, (block_r, 1, 1), 0)
        e = jnp.where(ridx < total_r, e, 0.0)
    out_ref[...] = jnp.sum(e, axis=0, keepdims=True)   # (1, H, W)


def _chip_tile_budget():
    """(bytes per operand per pipeline buffer, vmem_limit_bytes or None)."""
    try:
        kind = jax.devices()[0].device_kind.lower()
    except Exception:
        kind = ""
    if ("v6" in kind) or ("v7" in kind):
        # 2 operands x 2 buffers x 4 MiB = 16 MiB << 32 MiB scoped limit.
        return 4 << 20, 32 << 20
    # v5e-class / unknown: stay under the 16 MiB scoped-VMEM default.
    return 2 << 20, None


def _loss_sums_hw(x, y, view, *, criterion, side_weight=None, side=None):
    """Returns the (H, W) float32 map of sum_r elementwise_loss(x, y)[r, h, w]
    for x, y viewed (free contiguous reshape) as `view` = (R, H, W)."""
    assert x.shape == y.shape
    R, H, W = (int(v) for v in view)
    x3 = jnp.reshape(x, (R, H, W))
    y3 = jnp.reshape(y, (R, H, W))

    per_buf_budget, vmem_limit = _chip_tile_budget()
    itemsize = max(x3.dtype.itemsize, y3.dtype.itemsize)
    # VMEM footprint of one leading-axis slice (Mosaic pads (H, W) to the
    # native (8, 128) tiling; narrow dtypes pack, so itemsize is the scale).
    slice_bytes = _round_up(H, SUB) * _round_up(W, LANE) * itemsize
    block_r = max(1, min(R, per_buf_budget // max(slice_bytes, 1)))
    # Megacore: make the "parallel" grid axis >= 2 blocks whenever possible so
    # both TensorCores get work on v7x (harmless elsewhere).
    if R >= 2 and -(-R // block_r) < 2:
        block_r = -(-R // 2)
    num_blocks = -(-R // block_r)
    needs_mask = (num_blocks * block_r != R)

    out_slice_bytes = _round_up(H, SUB) * _round_up(W, LANE) * 4
    needed = 2 * 2 * block_r * slice_bytes + 2 * out_slice_bytes + (2 << 20)
    if vmem_limit is not None and needed > vmem_limit:
        vmem_limit = int(min(needed, 100 << 20))

    n_elem = R * H * W
    cost = pl.CostEstimate(
        flops=6 * n_elem,
        transcendentals=(2 * n_elem if criterion == "BCE" else 0),
        bytes_accessed=(x3.size * x3.dtype.itemsize
                        + y3.size * y3.dtype.itemsize
                        + num_blocks * H * W * 4),
    )

    kernel = functools.partial(
        _loss_sum_kernel, criterion=criterion, side_weight=side_weight,
        side=side, total_r=R, block_r=block_r, needs_mask=needs_mask)

    idx = lambda i: (i, 0, 0)
    # TODO(synk): for very large single-image inputs (R == 1, huge H*W) a
    # second grid axis over H-blocks would restore fine-grained pipelining.
    # TODO(synk): optionally pipeline_mode=pl.Buffered(3) on v7x.
    partials = pl.pallas_call(
        kernel,
        out_shape=jax.ShapeDtypeStruct((num_blocks, H, W), jnp.float32),
        grid_spec=pltpu.PrefetchScalarGridSpec(
            num_scalar_prefetch=0,
            grid=(num_blocks,),
            in_specs=[pl.BlockSpec((block_r, H, W), idx),
                      pl.BlockSpec((block_r, H, W), idx)],
            out_specs=pl.BlockSpec((1, H, W), idx),
        ),
        compiler_params=pltpu.CompilerParams(
            dimension_semantics=("parallel",),
            vmem_limit_bytes=vmem_limit),
        cost_estimate=cost,
    )(x3, y3)

    return jnp.sum(partials, axis=0)            # tiny (H, W) reduction


def _mean_from_sum(total, count):
    count = int(count)
    if count < (1 << 24):
        return total / np.float32(count)
    # exact count representation via a float64-derived reciprocal
    return total * np.float32(1.0 / float(count))


def _flat_view(shape):
    """Pick a lane/sublane-dense (R, H, W) factorization of a full flatten.
    Always a free (contiguous) reshape; never pads."""
    n = max(_prod(shape), 1)
    if n % (SUB * LANE) == 0:
        return (n // (SUB * LANE), SUB, LANE)
    if n % LANE == 0:
        return (n // LANE, 1, LANE)
    if len(shape) >= 2:
        return (_prod(shape[:-2]), int(shape[-2]), int(shape[-1]))
    return (1, 1, n)


def elementwise_loss_mean(x, y, *, criterion, side_weight=None, side=None):
    """mean( elementwise_loss(x, y) ), accumulation in float32."""
    n = max(_prod(x.shape), 1)
    sums = _loss_sums_hw(x, y, _flat_view(x.shape), criterion=criterion,
                         side_weight=side_weight, side=side)
    return _mean_from_sum(jnp.sum(sums), n)


# --------------------------------------------------------------------------
# Loss module (JAX port of the PyTorch Loss / InpaintingLoss /
# DirectionalWeightedMSELoss / SideWeightedLoss).
# --------------------------------------------------------------------------
_INPAINTING_MAP = {
    "InpaintingMSE": ("MSE", None, None),
    "InpaintingL1": ("L1", None, None),
    "InpaintingBCE": ("BCE", None, None),
    "InpaintingSideWeightedSmoothL1": ("SmoothL1", 5.0, "lower"),
    "InpaintingSideWeightedL1": ("L1", 5.0, "lower"),
    "InpaintingSideWeightedMSE": ("MSE", 5.0, "lower"),
}


class Loss:
    def __init__(self, criterion, hparams=None):
        hparams = hparams or {}
        self.criterion = criterion
        self.pass_kwargs = False
        self._side_weight = None
        self._side = None

        if criterion in ("L1", "MSE", "BCE", "SmoothL1"):
            self._base = criterion
        elif criterion in _INPAINTING_MAP:
            self._base, self._side_weight, self._side = _INPAINTING_MAP[criterion]
            self.pass_kwargs = True
            self.dim = 3 if "3D" in hparams["network_G"] else 2
        elif criterion == "DweightedMSE":
            self._base = "MSE"
            self.pass_kwargs = True
            self.dim = 3 if "3D" in hparams["network_G"] else 2
            cs = list(hparams["crop_size"])
            self.crop_size = [cs[0], cs[0], cs[0]] if len(cs) == 1 else cs
            self.weight_maps = self._get_weight_maps()
        else:
            raise NotImplementedError(f"Loss {criterion} is not implemented.")

    # exact closed forms of scipy.ndimage.distance_transform_edt for the
    # specific zero-sets used in DirectionalWeightedMSELoss.get_weight_maps
    def _get_weight_maps(self):
        w_maps = []
        if self.dim == 2:
            cs0, cs1 = self.crop_size[0], self.crop_size[1]
            i = np.arange(cs0, dtype=np.float64)[:, None]
            j = np.arange(cs1, dtype=np.float64)[None, :]
            # zeroed full bottom row at index cs0 -> distance = cs0 - i
            w_maps.append(np.broadcast_to(cs0 - i, (cs0, cs1)).copy())
            # zeroed full right column at index cs1 -> distance = cs1 - j
            w_maps.append(np.broadcast_to(cs1 - j, (cs0, cs1)).copy())
            # single zeroed corner (cs0, cs1) -> euclidean distance to it
            w_maps.append(np.sqrt((cs0 - i) ** 2 + (cs1 - j) ** 2))
        else:
            cs0, cs1, cs2 = self.crop_size[0], self.crop_size[1], self.crop_size[2]
            z = np.arange(cs0, dtype=np.float64)[:, None, None]
            xg = np.arange(cs1, dtype=np.float64)[None, :, None]
            yg = np.arange(cs2, dtype=np.float64)[None, None, :]
            w_maps.append(
                np.sqrt((cs0 - z) ** 2 + (cs1 - xg) ** 2 + (cs2 - yg) ** 2))
        return w_maps

    def __call__(self, input, target, **kwargs):
        if not self.pass_kwargs:
            return elementwise_loss_mean(input, target, criterion=self._base)
        pixel = kwargs["inpainting_pixel"]
        mode = np.asarray(kwargs["inpainting_mode"], dtype=bool)
        if self.criterion == "DweightedMSE":
            return self._dweighted_forward(input, target, pixel, mode)
        return self._inpainting_forward(input, target, pixel, mode)

    # -------- InpaintingLoss (2D): region masks factor out of the kernel ----
    def _inpainting_forward(self, input, target, pixel, mode):
        if self.dim == 3:
            # TODO(synk): 3D inpainting region indexing (ravel_multi_index
            # gather) not ported.
            raise NotImplementedError("3D inpainting not implemented")
        H, W = int(input.shape[-2]), int(input.shape[-1])
        lead = _prod(input.shape[:-2])
        sums = _loss_sums_hw(input, target, (lead, H, W),
                             criterion=self._base,
                             side_weight=self._side_weight, side=self._side)
        p1, p2 = int(pixel[1]), int(pixel[2])

        if (mode == [True, False]).all():
            return _mean_from_sum(jnp.sum(sums[0:p1, :]), lead * p1 * W)
        elif (mode == [False, True]).all():
            return _mean_from_sum(jnp.sum(sums[:, 0:p2]), lead * H * p2)
        elif (mode == [True, True]).all():
            loss_left = _mean_from_sum(jnp.sum(sums[:, 0:p2]), lead * H * p2)
            loss_tr = _mean_from_sum(jnp.sum(sums[0:p1, p2:]),
                                     lead * p1 * (W - p2))
            return loss_left + loss_tr
        raise ValueError("unsupported inpainting_mode")

    # -------- DirectionalWeightedMSELoss (2D) --------
    def _dweighted_forward(self, input, target, pixel, mode):
        if self.dim == 3:
            # TODO(synk): 3D directional-weighted region indexing not ported.
            raise NotImplementedError("3D DweightedMSE not implemented")
        H, W = int(input.shape[-2]), int(input.shape[-1])
        lead = _prod(input.shape[:-2])
        sums = _loss_sums_hw(input, target, (lead, H, W), criterion="MSE")
        p1, p2 = int(pixel[1]), int(pixel[2])

        def wsum(sub, wm2d):
            wj = jnp.asarray(np.asarray(wm2d, np.float32))
            return jnp.sum(sub * wj)

        if (mode == [True, False]).all():
            wm = self.weight_maps[0][0:p1, :]
            wm = wm / wm.max()
            return _mean_from_sum(wsum(sums[0:p1, :], wm), lead * p1 * W)
        elif (mode == [False, True]).all():
            wm = self.weight_maps[1][:, 0:p2]
            wm = wm / wm.max()
            return _mean_from_sum(wsum(sums[:, 0:p2], wm), lead * H * p2)
        elif (mode == [True, True]).all():
            wm_l = self.weight_maps[2][:, 0:p2]
            wm_l = wm_l / wm_l.max()
            loss_l = _mean_from_sum(wsum(sums[:, 0:p2], wm_l), lead * H * p2)
            wm_tr = self.weight_maps[2][0:p1, :]
            wm_tr = wm_tr / wm_tr.max()
            wm_tr = wm_tr[:, p2:]
            loss_tr = _mean_from_sum(wsum(sums[0:p1, p2:], wm_tr),
                                     lead * p1 * (W - p2))
            return loss_l + loss_tr
        raise ValueError("unsupported inpainting_mode")


# --------------------------------------------------------------------------
if __name__ == "__main__":
    key = jax.random.PRNGKey(0)
    k1, k2, k3, k4, k5, k6 = jax.random.split(key, 6)
    B, C, H, W = 2, 4, 16, 16                       # NCHW, like PyTorch
    x = jax.random.normal(k1, (B, C, H, W), jnp.float32)
    y = jax.random.normal(k2, (B, C, H, W), jnp.float32)

    # plain criteria
    mse = Loss("MSE", {})(x, y)
    sl1 = Loss("SmoothL1", {})(x, y)
    jax.block_until_ready((mse, sl1))
    d = x - y
    ref_mse = jnp.mean(d * d)
    ad = jnp.abs(d)
    ref_sl1 = jnp.mean(jnp.where(ad < 1.0, 0.5 * d * d, ad - 0.5))
    assert np.allclose(np.asarray(mse), np.asarray(ref_mse), rtol=1e-5, atol=1e-5)
    assert np.allclose(np.asarray(sl1), np.asarray(ref_sl1), rtol=1e-5, atol=1e-5)

    # odd non-128-aligned shape exercises the in-kernel tail mask (no jnp.pad)
    xo = jax.random.normal(k3, (3, 5, 7), jnp.float32)
    yo = jax.random.normal(k4, (3, 5, 7), jnp.float32)
    l1o = Loss("L1", {})(xo, yo)
    jax.block_until_ready(l1o)
    assert np.allclose(np.asarray(l1o), np.asarray(jnp.mean(jnp.abs(xo - yo))),
                       rtol=1e-5, atol=1e-5)

    # BCE (inputs in (0, 1))
    xb = jax.nn.sigmoid(jax.random.normal(k5, (B, C, H, W), jnp.float32))
    yb = jax.random.uniform(k6, (B, C, H, W), dtype=jnp.float32)
    bce = Loss("BCE", {})(xb, yb)
    jax.block_until_ready(bce)
    ref_bce = jnp.mean(-(yb * jnp.log(xb) + (1.0 - yb) * jnp.log(1.0 - xb)))
    assert np.allclose(np.asarray(bce), np.asarray(ref_bce), rtol=1e-5, atol=1e-5)

    # inpainting + side-weighted variant (2D), two regions from ONE pass
    inpainting_pixel = [0, 8, 6]                    # (z, x, y) convention
    inpainting_mode = np.array([True, True])
    loss_inp = Loss("InpaintingSideWeightedL1", {"network_G": "unet_2D"})(
        x, y, inpainting_pixel=inpainting_pixel,
        inpainting_mode=inpainting_mode)
    jax.block_until_ready(loss_inp)

    def _ref_side_l1(a, b, wgt=5.0):
        sw = jnp.where(a > b, wgt, 1.0)
        return jnp.mean(sw * jnp.abs(a - b))

    ref_inp = (_ref_side_l1(x[..., 0:6], y[..., 0:6])
               + _ref_side_l1(x[..., :8, 6:], y[..., :8, 6:]))
    assert np.allclose(np.asarray(loss_inp), np.asarray(ref_inp),
                       rtol=1e-5, atol=1e-5)

    # plain inpainting MSE, left-region-only mode [False, True]
    loss_im = Loss("InpaintingMSE", {"network_G": "unet_2D"})(
        x, y, inpainting_pixel=inpainting_pixel,
        inpainting_mode=np.array([False, True]))
    jax.block_until_ready(loss_im)
    ref_im = jnp.mean((x[..., 0:6] - y[..., 0:6]) ** 2)
    assert np.allclose(np.asarray(loss_im), np.asarray(ref_im),
                       rtol=1e-5, atol=1e-5)

    # directional weighted MSE (2D)
    loss_dw = Loss("DweightedMSE", {"crop_size": [H, W], "network_G": "resnet"})(
        x, y, inpainting_pixel=inpainting_pixel,
        inpainting_mode=np.array([True, False]))
    jax.block_until_ready(loss_dw)
    i_idx = np.arange(H, dtype=np.float64)[:, None]
    wm_ref = np.broadcast_to(H - i_idx, (H, W))[0:8, :]
    wm_ref = wm_ref / wm_ref.max()
    wj = jnp.asarray(wm_ref, jnp.float32)
    ref_dw = jnp.mean(wj[None, None]
                      * (x[..., 0:8, :] - y[..., 0:8, :]) ** 2)
    assert np.allclose(np.asarray(loss_dw), np.asarray(ref_dw),
                       rtol=1e-5, atol=1e-5)

    assert np.isfinite(np.asarray(loss_inp)) and np.isfinite(np.asarray(loss_dw))
    print("KERNEL_OK")
</pallas_src>

<mosaic_0001>
module attributes {stable_mosaic.version = 11 : i64} {
  func.func @_loss_sum_kernel(%arg0: i32, %arg1: memref<1x8x128xf32, #tpu.memory_space<vmem>>, %arg2: memref<1x8x128xf32, #tpu.memory_space<vmem>>, %arg3: memref<1x8x128xf32, #tpu.memory_space<vmem>>) attributes {dimension_semantics = [#tpu.dimension_semantics<parallel>], iteration_bounds = array<i64: 2>, scalar_prefetch = 0 : i64, scratch_operands = 0 : i64, tpu.core_type = #tpu.core_type<tc>, window_params = [{transform_indices = @transform_0, window_bounds = array<i64: 1, 8, 128>}, {transform_indices = @transform_1, window_bounds = array<i64: 1, 8, 128>}, {transform_indices = @transform_2, window_bounds = array<i64: 1, 8, 128>}]} {
    %c0 = arith.constant 0 : index
    %c0_0 = arith.constant 0 : index
    %c0_1 = arith.constant 0 : index
    %0 = vector.load %arg1[%c0, %c0_0, %c0_1] : memref<1x8x128xf32, #tpu.memory_space<vmem>>, vector<1x8x128xf32>
    %c0_2 = arith.constant 0 : index
    %c0_3 = arith.constant 0 : index
    %c0_4 = arith.constant 0 : index
    %1 = vector.load %arg2[%c0_2, %c0_3, %c0_4] : memref<1x8x128xf32, #tpu.memory_space<vmem>>, vector<1x8x128xf32>
    %2 = arith.subf %0, %1 : vector<1x8x128xf32>
    %3 = arith.mulf %2, %2 : vector<1x8x128xf32>
    %cst = arith.constant dense<0.000000e+00> : vector<8x128xf32>
    %4 = vector.multi_reduction <add>, %3, %cst [0] : vector<1x8x128xf32> to vector<8x128xf32>
    %5 = vector.shape_cast %4 : vector<8x128xf32> to vector<1x8x128xf32>
    %c0_5 = arith.constant 0 : index
    %c0_6 = arith.constant 0 : index
    %c0_7 = arith.constant 0 : index
    %6 = vector.load %arg3[%c0_5, %c0_6, %c0_7] : memref<1x8x128xf32, #tpu.memory_space<vmem>>, vector<1x8x128xf32>
    tpu.vector_store %arg3[%c0_5, %c0_6, %c0_7], %5 {strides = array<i32>} : memref<1x8x128xf32, #tpu.memory_space<vmem>>, vector<1x8x128xf32>,
    return
  }
  func.func @transform_0(%arg0: i32) -> (i32, i32, i32) {
    %c0_i32 = arith.constant 0 : i32
    %c0_i32_0 = arith.constant 0 : i32
    %c0_i32_1 = arith.constant 0 : i32
    return %arg0, %c0_i32, %c0_i32_0 : i32, i32, i32
  }
  func.func @transform_1(%arg0: i32) -> (i32, i32, i32) {
    %c0_i32 = arith.constant 0 : i32
    %c0_i32_0 = arith.constant 0 : i32
    %c0_i32_1 = arith.constant 0 : i32
    return %arg0, %c0_i32, %c0_i32_0 : i32, i32, i32
  }
  func.func @transform_2(%arg0: i32) -> (i32, i32, i32) {
    %c0_i32 = arith.constant 0 : i32
    %c0_i32_0 = arith.constant 0 : i32
    %c0_i32_1 = arith.constant 0 : i32
    return %arg0, %c0_i32, %c0_i32_0 : i32, i32, i32
  }
}

</mosaic_0001>

<llo_original>
// kernel: tpu_custom_call.1
$region0: #{tpu_custom_call.1}
  #allocation0 [shape = 'u32[]', space=smem, size = 0x4, offset = 0x4, fixed_abs, tag = 'smem constant byte address 0x4 - core index']
  #allocation1 [shape = 'u32[144,128]{1,0:T(1,128)}', space=vmem, size = 0x12000, scoped, tag = 'internal scratch']
  %s0 = inlined_call_operand.hbm [shape: f32[2,8,128], index: 0, kind: input, shape index: {}]
  %s1 = inlined_call_operand.hbm [shape: f32[2,8,128], index: 1, kind: input, shape index: {}]
  %s2 = inlined_call_operand.hbm [shape: f32[2,8,128], index: 2, kind: output, shape index: {}]
  %s3 = sld [smem:[#allocation0]]
  $region49: #{tpu_custom_call.1} parent=0
    _
  %s5 = ssub.s32 1, %s3
  %s6 = scalar_select 0, %s5, %s3
  $region1: #{tpu_custom_call.1} parent=0
    #allocation2 [shape = 'u8[8192]{0}', space=vmem, size = 0x2000, scoped, tag = 'input window, operand 0']
    #allocation3 [shape = 's32[2]{0}', space=sflag, size = 0x8, scoped, tag = 'scoped memory for tpu_custom_call.1']
    #allocation4 [shape = 's32[2]{0}', space=sflag, size = 0x8, scoped, tag = 'scoped memory for tpu_custom_call.1']
    #allocation5 [shape = 'u8[8192]{0}', space=vmem, size = 0x2000, scoped, tag = 'input window, operand 1']
    #allocation6 [shape = 's32[2]{0}', space=sflag, size = 0x8, scoped, tag = 'scoped memory for tpu_custom_call.1']
    #allocation7 [shape = 'u8[8192]{0}', space=vmem, size = 0x2000, scoped, tag = 'output window, operand 0']
    %7 = vsyncpa [#allocation3], 0
    %s8 = scalar_lea.sflag [#allocation3], 1
    %9 = vsyncpa %s8, 0
    %10 = vsyncpa [#allocation6], 0
    %s11 = scalar_lea.sflag [#allocation6], 1
    %12 = vsyncpa %s11, 0
    %13 = vsyncpa [#allocation4], 0
    %s14 = scalar_lea.sflag [#allocation4], 1
    %15 = vsyncpa %s14, 0
    loop: start=0, step=1, limit=4
    $region2: #{tpu_custom_call.1} parent=1 // loop_pre_header
      _
    $region3: #{tpu_custom_call.1} parent=1 // loop_header
      %s17 = sphi 0, %s21
      %p18 = scmp.ge.s32.totalorder %s17, 4
      %s27 = sphi 0, %s29
      %s30 = sphi 0, %s27
      %s31 = sphi 0, %s30
      %s47 = sphi 0, %s31
      %s53 = sphi 0, %s55
      %s56 = sphi 0, %s53
      %s57 = sphi 0, %s56
      %s73 = sphi 0, %s57
      %s79 = sphi 0, %s81
      %s82 = sphi 0, %s79
      %s83 = sphi 0, %s82
      %s99 = sphi 0, %s83
    $region4: #{tpu_custom_call.1} parent=1 // loop_header_branch
      %20 = sbr.rel (%p18) target = $region8
    $region5: #{tpu_custom_call.1} parent=1 // loop_body
      %s22 = ssub.s32 %s17, 1
      %s23 = ssub.s32 %s17, 2
      %s24 = sadd.s32 %s17, 1
      %s25 = ssub.s32 %s17, %s24
      %p26 = scmp.eq.s32.totalorder %s25, 0
      %s28 = sadd.s32 %s27, 1
      %s29 = scalar_select %p26, %s27, %s28
      %p32 = pneg %p26
      %p33 = scmp.eq.s32.totalorder %s17, 1
      %p34 = por %p32, %p33
      %p35 = scmp.ne.s32.totalorder %s27, %s30
      %p36 = scmp.eq.s32.totalorder %s17, 0
      %p37 = por %p35, %p36
      %p38 = scmp.ne.s32.totalorder %s27, %s30
      %p39 = scmp.eq.s32.totalorder %s22, 1
      %p40 = por %p38, %p39
      %p41 = scmp.ne.s32.totalorder %s30, %s31
      %p42 = scmp.eq.s32.totalorder %s22, 0
      %p43 = por %p41, %p42
      %p44 = scmp.ne.s32.totalorder %s30, %s31
      %p45 = scmp.eq.s32.totalorder %s23, 1
      %p46 = por %p44, %p45
      %p48 = scmp.ne.s32.totalorder %s31, %s47
      %p49 = scmp.eq.s32.totalorder %s23, 0
      %p50 = por %p48, %p49
      %s51 = ssub.s32 %s17, %s24
      %p52 = scmp.eq.s32.totalorder %s51, 0
      %s54 = sadd.s32 %s53, 1
      %s55 = scalar_select %p52, %s53, %s54
      %p58 = pneg %p52
      %p59 = scmp.eq.s32.totalorder %s17, 1
      %p60 = por %p58, %p59
      %p61 = scmp.ne.s32.totalorder %s53, %s56
      %p62 = scmp.eq.s32.totalorder %s17, 0
      %p63 = por %p61, %p62
      %p64 = scmp.ne.s32.totalorder %s53, %s56
      %p65 = scmp.eq.s32.totalorder %s22, 1
      %p66 = por %p64, %p65
      %p67 = scmp.ne.s32.totalorder %s56, %s57
      %p68 = scmp.eq.s32.totalorder %s22, 0
      %p69 = por %p67, %p68
      %p70 = scmp.ne.s32.totalorder %s56, %s57
      %p71 = scmp.eq.s32.totalorder %s23, 1
      %p72 = por %p70, %p71
      %p74 = scmp.ne.s32.totalorder %s57, %s73
      %p75 = scmp.eq.s32.totalorder %s23, 0
      %p76 = por %p74, %p75
      %s77 = ssub.s32 %s17, %s24
      %p78 = scmp.eq.s32.totalorder %s77, 0
      %s80 = sadd.s32 %s79, 1
      %s81 = scalar_select %p78, %s79, %s80
      %p84 = pneg %p78
      %p85 = scmp.eq.s32.totalorder %s17, 1
      %p86 = por %p84, %p85
      %p87 = scmp.ne.s32.totalorder %s79, %s82
      %p88 = scmp.eq.s32.totalorder %s17, 0
      %p89 = por %p87, %p88
      %p90 = scmp.ne.s32.totalorder %s79, %s82
      %p91 = scmp.eq.s32.totalorder %s22, 1
      %p92 = por %p90, %p91
      %p93 = scmp.ne.s32.totalorder %s82, %s83
      %p94 = scmp.eq.s32.totalorder %s22, 0
      %p95 = por %p93, %p94
      %p96 = scmp.ne.s32.totalorder %s82, %s83
      %p97 = scmp.eq.s32.totalorder %s23, 1
      %p98 = por %p96, %p97
      %p100 = scmp.ne.s32.totalorder %s83, %s99
      %p101 = scmp.eq.s32.totalorder %s23, 0
      %p102 = por %p100, %p101
      %p103 = scmp.le.s32.totalorder 1, %s17
      %p104 = scmp.lt.s32.totalorder %s17, 3
      %p105 = pnand %p103, %p104
      %p106 = pneg %p105
      // Predicated region
      $region9: #{tpu_custom_call.1} parent=5 // pred_check
        _
      $region10: #{tpu_custom_call.1} parent=5 // pred_check_branch
        %108 = sbr.rel (%p105) target = $region12
      $region11: #{tpu_custom_call.1} parent=5 // pred_region
        %s109 = ssub.s32 %s17, 1
      $region12: #{tpu_custom_call.1} parent=5 // pred_fallthru
        _
      %p110 = scmp.lt.s32.totalorder %s17, 2
      // Predicated region
      $region13: #{tpu_custom_call.1} parent=5 // pred_check
        %p111 = pneg %p110
      $region14: #{tpu_custom_call.1} parent=5 // pred_check_branch
        %113 = sbr.rel (%p111) target = $region16
      $region15: #{tpu_custom_call.1} parent=5 // pred_region
        // Predicated region
        $region17: #{tpu_custom_call.1} parent=15 // pred_check
          %p114 = pneg %p37
        $region18: #{tpu_custom_call.1} parent=15 // pred_check_branch
          %116 = sbr.rel (%p114) target = $region20
        $region19: #{tpu_custom_call.1} parent=15 // pred_region
          %s117 = sand.u32 %s27, 1
          %s118 = scalar_lea.sflag [#allocation3], %s117
          %s119 = sand.u32 %s27, 1
          %s120 = smul.addr %s119, 8
          %s121 = scalar_lea.vmem [#allocation2], %s120
          %s123 = ssub.s32 128, 128
          %124 = vsyncadd %s118, %s123
          %s125 = smul.addr %s17, 128
          %s126 = scalar_lea.hbm %s0, %s125
          %s128 = sshll.u32 %s121, 4
          %s129 = int_to_ptr.vmem [resolvable:$true] %s128
          %131 = dma.hbm_to_vmem [thread:$0]  %s126, 128, %s129, %s118
        $region20: #{tpu_custom_call.1} parent=15 // pred_fallthru
          _
        // Predicated region
        $region21: #{tpu_custom_call.1} parent=15 // pred_check
          %p132 = pneg %p63
        $region22: #{tpu_custom_call.1} parent=15 // pred_check_branch
          %134 = sbr.rel (%p132) target = $region24
        $region23: #{tpu_custom_call.1} parent=15 // pred_region
          %s135 = sand.u32 %s53, 1
          %s136 = scalar_lea.sflag [#allocation6], %s135
          %s137 = sand.u32 %s53, 1
          %s138 = smul.addr %s137, 8
          %s139 = scalar_lea.vmem [#allocation5], %s138
          %s141 = ssub.s32 128, 128
          %142 = vsyncadd %s136, %s141
          %s143 = smul.addr %s17, 128
          %s144 = scalar_lea.hbm %s1, %s143
          %s146 = sshll.u32 %s139, 4
          %s147 = int_to_ptr.vmem [resolvable:$true] %s146
          %149 = dma.hbm_to_vmem [thread:$0]  %s144, 128, %s147, %s136
        $region24: #{tpu_custom_call.1} parent=15 // pred_fallthru
          _
      $region16: #{tpu_custom_call.1} parent=5 // pred_fallthru
        _
      %p150 = scmp.le.s32.totalorder 1, %s17
      %p151 = scmp.lt.s32.totalorder %s17, 3
      %p152 = pnand %p150, %p151
      %p153 = pneg %p152
      // Predicated region
      $region25: #{tpu_custom_call.1} parent=5 // pred_check
        _
      $region26: #{tpu_custom_call.1} parent=5 // pred_check_branch
        %155 = sbr.rel (%p152) target = $region28
      $region27: #{tpu_custom_call.1} parent=5 // pred_region
        %s156 = ssub.s32 %s17, 1
        %s157 = sand.u32 %s30, 1
        %s158 = scalar_lea.sflag [#allocation3], %s157
        %s159 = sand.u32 %s30, 1
        %s160 = smul.addr %s159, 8
        %s161 = scalar_lea.vmem [#allocation2], %s160
        // Predicated region
        $region29: #{tpu_custom_call.1} parent=27 // pred_check
          %p162 = pneg %p43
        $region30: #{tpu_custom_call.1} parent=27 // pred_check_branch
          %164 = sbr.rel (%p162) target = $region32
        $region31: #{tpu_custom_call.1} parent=27 // pred_region
          %165 = dma.done %s158, 128
        $region32: #{tpu_custom_call.1} parent=27 // pred_fallthru
          _
        %s166 = sand.u32 %s56, 1
        %s167 = scalar_lea.sflag [#allocation6], %s166
        %s168 = sand.u32 %s56, 1
        %s169 = smul.addr %s168, 8
        %s170 = scalar_lea.vmem [#allocation5], %s169
        // Predicated region
        $region33: #{tpu_custom_call.1} parent=27 // pred_check
          %p171 = pneg %p69
        $region34: #{tpu_custom_call.1} parent=27 // pred_check_branch
          %173 = sbr.rel (%p171) target = $region36
        $region35: #{tpu_custom_call.1} parent=27 // pred_region
          %174 = dma.done %s167, 128
        $region36: #{tpu_custom_call.1} parent=27 // pred_fallthru
          _
        %s175 = sand.u32 %s30, 1
        %s176 = scalar_lea.sflag [#allocation3], %s175
        %s177 = sand.u32 %s30, 1
        %s178 = smul.addr %s177, 8
        %s179 = scalar_lea.vmem [#allocation2], %s178
        %p180 = pneg %p43
        %p181 = pneg %p40
        %s182 = sand.u32 %s56, 1
        %s183 = scalar_lea.sflag [#allocation6], %s182
        %s184 = sand.u32 %s56, 1
        %s185 = smul.addr %s184, 8
        %s186 = scalar_lea.vmem [#allocation5], %s185
        %p187 = pneg %p69
        %p188 = pneg %p66
        %p189 = pneg %p95
        %p190 = pneg %p92
        %s191 = sand.u32 %s82, 1
        %s192 = scalar_lea.sflag [#allocation4], %s191
        %s193 = sand.u32 %s82, 1
        %s194 = smul.addr %s193, 8
        %s195 = scalar_lea.vmem [#allocation7], %s194
        %v196 = vld [vmem:[%s161] sm:$0xff]
        %v197 = vld [vmem:[%s170] sm:$0xff]
        %v198 = vsub.f32 %v196, %v197
        %v199 = vmul.f32 %v198, %v198
        %v200 = vadd.f32 %v199, 0.0
        %201 = vst [vmem:[%s195] sm:$0xff] %v200
        %s202 = sand.u32 %s82, 1
        %s203 = scalar_lea.sflag [#allocation4], %s202
        %s204 = sand.u32 %s82, 1
        %s205 = smul.addr %s204, 8
        %s206 = scalar_lea.vmem [#allocation7], %s205
        // Predicated region
        $region37: #{tpu_custom_call.1} parent=27 // pred_check
          %p207 = pneg %p92
        $region38: #{tpu_custom_call.1} parent=27 // pred_check_branch
          %209 = sbr.rel (%p207) target = $region40
        $region39: #{tpu_custom_call.1} parent=27 // pred_region
          %s211 = ssub.s32 128, 128
          %212 = vsyncadd %s203, %s211
          %s213 = smul.addr %s22, 128
          %s214 = scalar_lea.hbm %s2, %s213
          %s216 = sshll.u32 %s206, 4
          %s217 = int_to_ptr.vmem [resolvable:$true] %s216
          %219 = dma.vmem_to_hbm [thread:$0]  %s217, 128, %s214, %s203
        $region40: #{tpu_custom_call.1} parent=27 // pred_fallthru
          _
      $region28: #{tpu_custom_call.1} parent=5 // pred_fallthru
        _
      %p220 = scmp.le.s32.totalorder 2, %s17
      // Predicated region
      $region41: #{tpu_custom_call.1} parent=5 // pred_check
        %p221 = pneg %p220
      $region42: #{tpu_custom_call.1} parent=5 // pred_check_branch
        %223 = sbr.rel (%p221) target = $region44
      $region43: #{tpu_custom_call.1} parent=5 // pred_region
        %s224 = ssub.s32 %s17, 2
        // Predicated region
        $region45: #{tpu_custom_call.1} parent=43 // pred_check
          %p225 = pneg %p98
        $region46: #{tpu_custom_call.1} parent=43 // pred_check_branch
          %227 = sbr.rel (%p225) target = $region48
        $region47: #{tpu_custom_call.1} parent=43 // pred_region
          %s228 = sand.u32 %s83, 1
          %s229 = scalar_lea.sflag [#allocation4], %s228
          %s230 = sand.u32 %s83, 1
          %s231 = smul.addr %s230, 8
          %s232 = scalar_lea.vmem [#allocation7], %s231
          %233 = dma.done %s229, 128
        $region48: #{tpu_custom_call.1} parent=43 // pred_fallthru
          _
      $region44: #{tpu_custom_call.1} parent=5 // pred_fallthru
        _
    $region6: #{tpu_custom_call.1} parent=1 // loop_footer
      %s21 = sadd.s32 1, %s17
    $region7: #{tpu_custom_call.1} parent=1 // loop_footer_branch
      %16 = sbr.rel target = $region3
    $region8: #{tpu_custom_call.1} parent=1 // loop_exit
      _
    %234 = vsyncpa [#allocation3], 1
    %s235 = scalar_lea.sflag [#allocation3], 1
    %236 = vsyncpa %s235, 1
    %237 = vsyncpa [#allocation6], 1
    %s238 = scalar_lea.sflag [#allocation6], 1
    %239 = vsyncpa %s238, 1
    %240 = vsyncpa [#allocation4], 1
    %s241 = scalar_lea.sflag [#allocation4], 1
    %242 = vsyncpa %s241, 1

</llo_original>
